<compile_context>
chip_gen: v6e
topology: v6e:2x2x1
jax: 0.10.0
libtpu: 0.0.40
codegen_flags: <defaults>
</compile_context>

<pallas_src>
import jax
import jax.numpy as jnp
from jax.experimental import pallas as pl
from jax.experimental.pallas import tpu as pltpu


def mlp_kernel(x_ref, w1_ref, b1_ref, w2_ref, b2_ref, w3_ref, b3_ref,
               w4_ref, b4_ref, o_ref):
    """One batch tile: x (TM, 21) -> o (1, 1, TM)."""
    x = x_ref[...]                                                   # (TM, 21) f32

    h = jnp.dot(x, w1_ref[...], preferred_element_type=jnp.float32) + b1_ref[...]
    h = jnp.maximum(h, 0.0)
    h = jnp.dot(h, w2_ref[...], preferred_element_type=jnp.float32) + b2_ref[...]
    h = jnp.maximum(h, 0.0)
    h = jnp.dot(h, w3_ref[...], preferred_element_type=jnp.float32) + b3_ref[...]
    h = jnp.maximum(h, 0.0)

    # Final Linear(64, 1): contract h's feature dim against the (1, 64) weight
    # row (the q@k.T-style dot_general pattern) so the result comes out as a
    # lane-dense (1, TM) row vector instead of a 1-wide column.
    y = jax.lax.dot_general(
        w4_ref[...], h,                                # (1, 64) x (TM, 64)
        dimension_numbers=(((1,), (1,)), ((), ())),    # contract the 64-dim
        preferred_element_type=jnp.float32)            # -> (1, TM)
    y = y + b4_ref[...]                                # (1, 1) broadcast
    o_ref[...] = y.reshape(o_ref.shape).astype(o_ref.dtype)


def linear_regression_forward(x, params, *, block_m=512):
    """x: (B, 21) float32, params: dict of weights/biases. Returns (B, 1)."""
    B, in_features = x.shape
    w1, b1 = params["w1"], params["b1"]
    w2, b2 = params["w2"], params["b2"]
    w3, b3 = params["w3"], params["b3"]
    w4, b4 = params["w4"], params["b4"]

    # Batch tile: multiple of 8 (f32 sublane), capped at block_m.
    tm = min(block_m, pl.cdiv(B, 8) * 8)
    b_pad = pl.cdiv(B, tm) * tm
    n_tiles = b_pad // tm
    if b_pad != B:
        x = jnp.pad(x, ((0, b_pad - B), (0, 0)))

    # Weights/biases: whole-array blocks with a constant index_map -> resident
    # in VMEM across all grid steps (no per-step re-DMA).
    resident = lambda shape: pl.BlockSpec(shape, lambda i: (0,) * len(shape))

    out = pl.pallas_call(
        mlp_kernel,
        out_shape=jax.ShapeDtypeStruct((n_tiles, 1, tm), jnp.float32),
        grid=(n_tiles,),
        in_specs=[
            pl.BlockSpec((tm, in_features), lambda i: (i, 0)),   # x batch tile
            resident(w1.shape), resident(b1.shape),
            resident(w2.shape), resident(b2.shape),
            resident(w3.shape), resident(b3.shape),
            resident(w4.shape), resident(b4.shape),
        ],
        out_specs=pl.BlockSpec((1, 1, tm), lambda i: (i, 0, 0)),
        compiler_params=pltpu.CompilerParams(
            dimension_semantics=("parallel",)),      # megacore-shard the batch
    )(x, w1, b1, w2, b2, w3, b3, w4, b4)

    # (n_tiles, 1, tm) -> flat batch order -> (B, 1)
    return out.reshape(-1)[:B].reshape(B, 1)


def init_params(key):
    """Deterministic init matching the PyTorch module's layer shapes.
    PyTorch nn.Linear default: U(-1/sqrt(fan_in), 1/sqrt(fan_in)).

    Layers 1-3 weights are stored as (in_features, out_features) so the kernel
    computes y = x @ W + b; the final layer weight keeps the PyTorch
    (out_features=1, in_features=64) orientation for the transposed contraction.
    """
    dims = [(21, 64), (64, 64), (64, 64), (64, 1)]
    params = {}
    keys = jax.random.split(key, 2 * len(dims))
    for i, (fan_in, fan_out) in enumerate(dims):
        bound = 1.0 / float(jnp.sqrt(float(fan_in)))
        w_shape = (fan_out, fan_in) if i == len(dims) - 1 else (fan_in, fan_out)
        params[f"w{i + 1}"] = jax.random.uniform(
            keys[2 * i], w_shape, minval=-bound, maxval=bound, dtype=jnp.float32)
        params[f"b{i + 1}"] = jax.random.uniform(
            keys[2 * i + 1], (1, fan_out), minval=-bound, maxval=bound,
            dtype=jnp.float32)
    return params


def reference_forward(x, params):
    h = jnp.maximum(x @ params["w1"] + params["b1"], 0.0)
    h = jnp.maximum(h @ params["w2"] + params["b2"], 0.0)
    h = jnp.maximum(h @ params["w3"] + params["b3"], 0.0)
    return h @ params["w4"].T + params["b4"]


if __name__ == "__main__":
    key = jax.random.PRNGKey(0)
    k_params, k_x1, k_x2 = jax.random.split(key, 3)
    params = init_params(k_params)

    # Small, single-tile case (matches the module's natural small-batch use).
    x_small = jax.random.normal(k_x1, (8, 21), dtype=jnp.float32)
    out_small = jax.block_until_ready(linear_regression_forward(x_small, params))
    ref_small = reference_forward(x_small, params)
    assert out_small.shape == (8, 1), out_small.shape
    assert jnp.allclose(out_small, ref_small, atol=1e-4, rtol=1e-4), \
        "small-batch mismatch vs JAX reference"

    # Multi-tile case: exercises the batch grid, padding and the parallel axis.
    x_big = jax.random.normal(k_x2, (600, 21), dtype=jnp.float32)
    out_big = jax.block_until_ready(linear_regression_forward(x_big, params))
    ref_big = reference_forward(x_big, params)
    assert out_big.shape == (600, 1), out_big.shape
    assert jnp.allclose(out_big, ref_big, atol=1e-4, rtol=1e-4), \
        "tiled-batch mismatch vs JAX reference"

    print("KERNEL_OK")
</pallas_src>

<mosaic_0001>
module attributes {stable_mosaic.version = 11 : i64} {
  func.func @mlp_kernel(%arg0: i32, %arg1: memref<8x21xf32, #tpu.memory_space<vmem>>, %arg2: memref<21x64xf32, #tpu.memory_space<vmem>>, %arg3: memref<1x64xf32, #tpu.memory_space<vmem>>, %arg4: memref<64x64xf32, #tpu.memory_space<vmem>>, %arg5: memref<1x64xf32, #tpu.memory_space<vmem>>, %arg6: memref<64x64xf32, #tpu.memory_space<vmem>>, %arg7: memref<1x64xf32, #tpu.memory_space<vmem>>, %arg8: memref<1x64xf32, #tpu.memory_space<vmem>>, %arg9: memref<1x1xf32, #tpu.memory_space<vmem>>, %arg10: memref<1x1x8xf32, #tpu.memory_space<vmem>>) attributes {dimension_semantics = [#tpu.dimension_semantics<parallel>], iteration_bounds = array<i64: 1>, scalar_prefetch = 0 : i64, scratch_operands = 0 : i64, tpu.core_type = #tpu.core_type<tc>, window_params = [{transform_indices = @transform_0, window_bounds = array<i64: 8, 21>}, {pipeline_mode = #tpu.pipeline_mode<synchronous>, transform_indices = @transform_1, window_bounds = array<i64: 21, 64>}, {pipeline_mode = #tpu.pipeline_mode<synchronous>, transform_indices = @transform_2, window_bounds = array<i64: 1, 64>}, {pipeline_mode = #tpu.pipeline_mode<synchronous>, transform_indices = @transform_3, window_bounds = array<i64: 64, 64>}, {pipeline_mode = #tpu.pipeline_mode<synchronous>, transform_indices = @transform_4, window_bounds = array<i64: 1, 64>}, {pipeline_mode = #tpu.pipeline_mode<synchronous>, transform_indices = @transform_5, window_bounds = array<i64: 64, 64>}, {pipeline_mode = #tpu.pipeline_mode<synchronous>, transform_indices = @transform_6, window_bounds = array<i64: 1, 64>}, {pipeline_mode = #tpu.pipeline_mode<synchronous>, transform_indices = @transform_7, window_bounds = array<i64: 1, 64>}, {pipeline_mode = #tpu.pipeline_mode<synchronous>, transform_indices = @transform_8, window_bounds = array<i64: 1, 1>}, {transform_indices = @transform_9, window_bounds = array<i64: 1, 1, 8>}]} {
    %c0 = arith.constant 0 : index
    %c0_0 = arith.constant 0 : index
    %0 = vector.load %arg1[%c0, %c0_0] : memref<8x21xf32, #tpu.memory_space<vmem>>, vector<8x21xf32>
    %c0_1 = arith.constant 0 : index
    %c0_2 = arith.constant 0 : index
    %1 = vector.load %arg2[%c0_1, %c0_2] : memref<21x64xf32, #tpu.memory_space<vmem>>, vector<21x64xf32>
    %cst = arith.constant dense<0.000000e+00> : vector<8x64xf32>
    %2 = tpu.matmul %0, %1, %cst {dimension_numbers = #tpu.dot_dimension_numbers<[1], [0], [0], [1], [0, 0, 1, 1], [], []>} : vector<8x21xf32>, vector<21x64xf32>, vector<8x64xf32> -> vector<8x64xf32>
    %c0_3 = arith.constant 0 : index
    %c0_4 = arith.constant 0 : index
    %3 = vector.load %arg3[%c0_3, %c0_4] : memref<1x64xf32, #tpu.memory_space<vmem>>, vector<1x64xf32>
    %4 = vector.broadcast %3 : vector<1x64xf32> to vector<8x64xf32>
    %5 = arith.addf %2, %4 : vector<8x64xf32>
    %cst_5 = arith.constant 0.000000e+00 : f32
    %6 = vector.broadcast %cst_5 : f32 to vector<8x64xf32>
    %7 = arith.maximumf %5, %6 : vector<8x64xf32>
    %c0_6 = arith.constant 0 : index
    %c0_7 = arith.constant 0 : index
    %8 = vector.load %arg4[%c0_6, %c0_7] : memref<64x64xf32, #tpu.memory_space<vmem>>, vector<64x64xf32>
    %cst_8 = arith.constant dense<0.000000e+00> : vector<8x64xf32>
    %9 = tpu.matmul %7, %8, %cst_8 {dimension_numbers = #tpu.dot_dimension_numbers<[1], [0], [0], [1], [0, 0, 1, 1], [], []>} : vector<8x64xf32>, vector<64x64xf32>, vector<8x64xf32> -> vector<8x64xf32>
    %c0_9 = arith.constant 0 : index
    %c0_10 = arith.constant 0 : index
    %10 = vector.load %arg5[%c0_9, %c0_10] : memref<1x64xf32, #tpu.memory_space<vmem>>, vector<1x64xf32>
    %11 = vector.broadcast %10 : vector<1x64xf32> to vector<8x64xf32>
    %12 = arith.addf %9, %11 : vector<8x64xf32>
    %cst_11 = arith.constant 0.000000e+00 : f32
    %13 = vector.broadcast %cst_11 : f32 to vector<8x64xf32>
    %14 = arith.maximumf %12, %13 : vector<8x64xf32>
    %c0_12 = arith.constant 0 : index
    %c0_13 = arith.constant 0 : index
    %15 = vector.load %arg6[%c0_12, %c0_13] : memref<64x64xf32, #tpu.memory_space<vmem>>, vector<64x64xf32>
    %cst_14 = arith.constant dense<0.000000e+00> : vector<8x64xf32>
    %16 = tpu.matmul %14, %15, %cst_14 {dimension_numbers = #tpu.dot_dimension_numbers<[1], [0], [0], [1], [0, 0, 1, 1], [], []>} : vector<8x64xf32>, vector<64x64xf32>, vector<8x64xf32> -> vector<8x64xf32>
    %c0_15 = arith.constant 0 : index
    %c0_16 = arith.constant 0 : index
    %17 = vector.load %arg7[%c0_15, %c0_16] : memref<1x64xf32, #tpu.memory_space<vmem>>, vector<1x64xf32>
    %18 = vector.broadcast %17 : vector<1x64xf32> to vector<8x64xf32>
    %19 = arith.addf %16, %18 : vector<8x64xf32>
    %cst_17 = arith.constant 0.000000e+00 : f32
    %20 = vector.broadcast %cst_17 : f32 to vector<8x64xf32>
    %21 = arith.maximumf %19, %20 : vector<8x64xf32>
    %c0_18 = arith.constant 0 : index
    %c0_19 = arith.constant 0 : index
    %22 = vector.load %arg8[%c0_18, %c0_19] : memref<1x64xf32, #tpu.memory_space<vmem>>, vector<1x64xf32>
    %cst_20 = arith.constant dense<0.000000e+00> : vector<1x8xf32>
    %23 = tpu.matmul %22, %21, %cst_20 {dimension_numbers = #tpu.dot_dimension_numbers<[1], [1], [0], [0], [0, 0, 1, 0], [], []>} : vector<1x64xf32>, vector<8x64xf32>, vector<1x8xf32> -> vector<1x8xf32>
    %c0_21 = arith.constant 0 : index
    %c0_22 = arith.constant 0 : index
    %24 = vector.load %arg9[%c0_21, %c0_22] : memref<1x1xf32, #tpu.memory_space<vmem>>, vector<1x1xf32>
    %25 = vector.broadcast %24 : vector<1x1xf32> to vector<1x8xf32>
    %26 = arith.addf %23, %25 : vector<1x8xf32>
    %27 = vector.shape_cast %26 : vector<1x8xf32> to vector<1x1x8xf32>
    %c0_23 = arith.constant 0 : index
    %c0_24 = arith.constant 0 : index
    %c0_25 = arith.constant 0 : index
    %28 = vector.load %arg10[%c0_23, %c0_24, %c0_25] : memref<1x1x8xf32, #tpu.memory_space<vmem>>, vector<1x1x8xf32>
    tpu.vector_store %arg10[%c0_23, %c0_24, %c0_25], %27 {strides = array<i32>} : memref<1x1x8xf32, #tpu.memory_space<vmem>>, vector<1x1x8xf32>,
    return
  }
  func.func @transform_0(%arg0: i32) -> (i32, i32) {
    %c0_i32 = arith.constant 0 : i32
    %c0_i32_0 = arith.constant 0 : i32
    return %arg0, %c0_i32 : i32, i32
  }
  func.func @transform_1(%arg0: i32) -> (i32, i32) {
    %c0_i32 = arith.constant 0 : i32
    %c0_i32_0 = arith.constant 0 : i32
    %c0_i32_1 = arith.constant 0 : i32
    return %c0_i32, %c0_i32_0 : i32, i32
  }
  func.func @transform_2(%arg0: i32) -> (i32, i32) {
    %c0_i32 = arith.constant 0 : i32
    %c0_i32_0 = arith.constant 0 : i32
    %c0_i32_1 = arith.constant 0 : i32
    return %c0_i32, %c0_i32_0 : i32, i32
  }
  func.func @transform_3(%arg0: i32) -> (i32, i32) {
    %c0_i32 = arith.constant 0 : i32
    %c0_i32_0 = arith.constant 0 : i32
    %c0_i32_1 = arith.constant 0 : i32
    return %c0_i32, %c0_i32_0 : i32, i32
  }
  func.func @transform_4(%arg0: i32) -> (i32, i32) {
    %c0_i32 = arith.constant 0 : i32
    %c0_i32_0 = arith.constant 0 : i32
    %c0_i32_1 = arith.constant 0 : i32
    return %c0_i32, %c0_i32_0 : i32, i32
  }
  func.func @transform_5(%arg0: i32) -> (i32, i32) {
    %c0_i32 = arith.constant 0 : i32
    %c0_i32_0 = arith.constant 0 : i32
    %c0_i32_1 = arith.constant 0 : i32
    return %c0_i32, %c0_i32_0 : i32, i32
  }
  func.func @transform_6(%arg0: i32) -> (i32, i32) {
    %c0_i32 = arith.constant 0 : i32
    %c0_i32_0 = arith.constant 0 : i32
    %c0_i32_1 = arith.constant 0 : i32
    return %c0_i32, %c0_i32_0 : i32, i32
  }
  func.func @transform_7(%arg0: i32) -> (i32, i32) {
    %c0_i32 = arith.constant 0 : i32
    %c0_i32_0 = arith.constant 0 : i32
    %c0_i32_1 = arith.constant 0 : i32
    return %c0_i32, %c0_i32_0 : i32, i32
  }
  func.func @transform_8(%arg0: i32) -> (i32, i32) {
    %c0_i32 = arith.constant 0 : i32
    %c0_i32_0 = arith.constant 0 : i32
    %c0_i32_1 = arith.constant 0 : i32
    return %c0_i32, %c0_i32_0 : i32, i32
  }
  func.func @transform_9(%arg0: i32) -> (i32, i32, i32) {
    %c0_i32 = arith.constant 0 : i32
    %c0_i32_0 = arith.constant 0 : i32
    %c0_i32_1 = arith.constant 0 : i32
    return %arg0, %c0_i32, %c0_i32_0 : i32, i32, i32
  }
}

</mosaic_0001>

<llo_original>
// kernel: tpu_custom_call.1
$region0: #{tpu_custom_call.1}
  #allocation0 [shape = 'u32[]', space=smem, size = 0x4, offset = 0x4, fixed_abs, tag = 'smem constant byte address 0x4 - core index']
  #allocation1 [shape = 'u32[144,128]{1,0:T(1,128)}', space=vmem, size = 0x12000, scoped, tag = 'internal scratch']
  #allocation2 [shape = 'f32[1,1]{1,0:T(1,128)S(1)}', space=vmem, size = 0x200, scoped, tag = 'scoped memory for tpu_custom_call.1']
  %s0 = inlined_call_operand.hbm [shape: f32[8,21], index: 0, kind: input, shape index: {}]
  %s1 = inlined_call_operand.hbm [shape: f32[21,64], index: 1, kind: input, shape index: {}]
  %s2 = inlined_call_operand.vmem [shape: f32[1,64], index: 2, kind: input, shape index: {}]
  %s3 = inlined_call_operand.hbm [shape: f32[64,64], index: 3, kind: input, shape index: {}]
  %s4 = inlined_call_operand.vmem [shape: f32[1,64], index: 4, kind: input, shape index: {}]
  %s5 = inlined_call_operand.hbm [shape: f32[64,64], index: 5, kind: input, shape index: {}]
  %s6 = inlined_call_operand.vmem [shape: f32[1,64], index: 6, kind: input, shape index: {}]
  %s7 = inlined_call_operand.vmem [shape: f32[1,64], index: 7, kind: input, shape index: {}]
  %s8 = inlined_call_operand.<no memory space> [shape: f32[1,1], index: 8, kind: input, shape index: {}]
  %s9 = inlined_call_operand.hbm [shape: f32[1,1,8], index: 9, kind: output, shape index: {}]
  %s10 = sld [smem:[#allocation0]]
  $region62: #{tpu_custom_call.1} parent=0
    _
  %s12 = ssub.s32 1, %s10
  %s13 = scalar_select 0, %s12, %s10
  %v14 = vstv %s8
  %15 = vst [vmem:[#allocation2] sm:$0x1] %v14
  $region1: #{tpu_custom_call.1} parent=0
    #allocation3 [shape = 'u8[4096]{0}', space=vmem, size = 0x1000, scoped, tag = 'input window, operand 0, single buffered']
    #allocation4 [shape = 's32[1]{0}', space=sflag, size = 0x4, scoped, tag = 'scoped memory for tpu_custom_call.1']
    #allocation5 [shape = 's32[1]{0}', space=sflag, size = 0x4, scoped, tag = 'scoped memory for tpu_custom_call.1']
    #allocation6 [shape = 'u8[12288]{0}', space=vmem, size = 0x3000, scoped, tag = 'input window, operand 1, single buffered']
    #allocation7 [shape = 's32[1]{0}', space=sflag, size = 0x4, scoped, tag = 'scoped memory for tpu_custom_call.1']
    #allocation8 [shape = 'u8[32768]{0}', space=vmem, size = 0x8000, scoped, tag = 'input window, operand 3, single buffered']
    #allocation9 [shape = 'u8[32768]{0}', space=vmem, size = 0x8000, scoped, tag = 'input window, operand 5, single buffered']
    #allocation10 [shape = 's32[1]{0}', space=sflag, size = 0x4, scoped, tag = 'scoped memory for tpu_custom_call.1']
    #allocation11 [shape = 'u8[512]{0}', space=vmem, size = 0x400, scoped, tag = 'output window, operand 0, single buffered']
    %16 = vsyncpa [#allocation4], 0
    %17 = vsyncpa [#allocation7], 0
    %18 = vsyncpa [#allocation10], 0
    %19 = vsyncpa [#allocation5], 0
    // Predicated region
    $region2: #{tpu_custom_call.1} parent=1 // pred_check
      _
    $region3: #{tpu_custom_call.1} parent=1 // pred_check_branch
      %21 = sbr.rel (0) target = $region5
    $region4: #{tpu_custom_call.1} parent=1 // pred_region
      %s23 = ssub.s32 128, 128
      %24 = vsyncadd [#allocation4], %s23
      %s26 = sshll.u32 [#allocation3], 4
      %s27 = int_to_ptr.vmem [resolvable:$true] %s26
      %29 = dma.hbm_to_vmem [thread:$0]  %s0, 128, %s27, [#allocation4]
    $region5: #{tpu_custom_call.1} parent=1 // pred_fallthru
      _
    // Predicated region
    $region6: #{tpu_custom_call.1} parent=1 // pred_check
      _
    $region7: #{tpu_custom_call.1} parent=1 // pred_check_branch
      %31 = sbr.rel (0) target = $region9
    $region8: #{tpu_custom_call.1} parent=1 // pred_region
      %s33 = ssub.s32 384, 384
      %34 = vsyncadd [#allocation7], %s33
      %s35 = sshll.u32 [#allocation6], 4
      %s36 = int_to_ptr.vmem [resolvable:$true] %s35
      %41 = dma.hbm_to_vmem [thread:$0]  %s1, 384, %s36, [#allocation7], 128, 128, 8
    $region9: #{tpu_custom_call.1} parent=1 // pred_fallthru
      _
    // Predicated region
    $region10: #{tpu_custom_call.1} parent=1 // pred_check
      _
    $region11: #{tpu_custom_call.1} parent=1 // pred_check_branch
      %43 = sbr.rel (0) target = $region13
    $region12: #{tpu_custom_call.1} parent=1 // pred_region
      _
    $region13: #{tpu_custom_call.1} parent=1 // pred_fallthru
      _
    // Predicated region
    $region14: #{tpu_custom_call.1} parent=1 // pred_check
      _
    $region15: #{tpu_custom_call.1} parent=1 // pred_check_branch
      %45 = sbr.rel (0) target = $region17
    $region16: #{tpu_custom_call.1} parent=1 // pred_region
      %s47 = ssub.s32 1024, 1024
      %48 = vsyncadd [#allocation7], %s47
      %s49 = sshll.u32 [#allocation8], 4
      %s50 = int_to_ptr.vmem [resolvable:$true] %s49
      %55 = dma.hbm_to_vmem [thread:$0]  %s3, 1024, %s50, [#allocation7], 128, 128, 8
    $region17: #{tpu_custom_call.1} parent=1 // pred_fallthru
      _
    // Predicated region
    $region18: #{tpu_custom_call.1} parent=1 // pred_check
      _
    $region19: #{tpu_custom_call.1} parent=1 // pred_check_branch
      %57 = sbr.rel (0) target = $region21
    $region20: #{tpu_custom_call.1} parent=1 // pred_region
      _
    $region21: #{tpu_custom_call.1} parent=1 // pred_fallthru
      _
    // Predicated region
    $region22: #{tpu_custom_call.1} parent=1 // pred_check
      _
    $region23: #{tpu_custom_call.1} parent=1 // pred_check_branch
      %59 = sbr.rel (0) target = $region25
    $region24: #{tpu_custom_call.1} parent=1 // pred_region
      %s61 = ssub.s32 1024, 1024
      %62 = vsyncadd [#allocation10], %s61
      %s63 = sshll.u32 [#allocation9], 4
      %s64 = int_to_ptr.vmem [resolvable:$true] %s63
      %69 = dma.hbm_to_vmem [thread:$0]  %s5, 1024, %s64, [#allocation10], 128, 128, 8
    $region25: #{tpu_custom_call.1} parent=1 // pred_fallthru
      _
    // Predicated region
    $region26: #{tpu_custom_call.1} parent=1 // pred_check
      _
    $region27: #{tpu_custom_call.1} parent=1 // pred_check_branch
      %71 = sbr.rel (0) target = $region29
    $region28: #{tpu_custom_call.1} parent=1 // pred_region
      _
    $region29: #{tpu_custom_call.1} parent=1 // pred_fallthru
      _
    // Predicated region
    $region30: #{tpu_custom_call.1} parent=1 // pred_check
      _
    $region31: #{tpu_custom_call.1} parent=1 // pred_check_branch
      %73 = sbr.rel (0) target = $region33
    $region32: #{tpu_custom_call.1} parent=1 // pred_region
      _
    $region33: #{tpu_custom_call.1} parent=1 // pred_fallthru
      _
    // Predicated region
    $region34: #{tpu_custom_call.1} parent=1 // pred_check
      _
    $region35: #{tpu_custom_call.1} parent=1 // pred_check_branch
      %75 = sbr.rel (0) target = $region37
    $region36: #{tpu_custom_call.1} parent=1 // pred_region
      _
    $region37: #{tpu_custom_call.1} parent=1 // pred_fallthru
      _
    // Predicated region
    $region38: #{tpu_custom_call.1} parent=1 // pred_check
      _
    $region39: #{tpu_custom_call.1} parent=1 // pred_check_branch
      %77 = sbr.rel (0) target = $region41
    $region40: #{tpu_custom_call.1} parent=1 // pred_region
      %78 = dma.done [#allocation4], 128
    $region41: #{tpu_custom_call.1} parent=1 // pred_fallthru
      _
    // Predicated region
    $region42: #{tpu_custom_call.1} parent=1 // pred_check
      _
    $region43: #{tpu_custom_call.1} parent=1 // pred_check_branch
      %80 = sbr.rel (0) target = $region45
    $region44: #{tpu_custom_call.1} parent=1 // pred_region
      %81 = dma.done [#allocation7], 384
    $region45: #{tpu_custom_call.1} parent=1 // pred_fallthru
      _
    // Predicated region
    $region46: #{tpu_custom_call.1} parent=1 // pred_check
      _
    $region47: #{tpu_custom_call.1} parent=1 // pred_check_branch
      %83 = sbr.rel (0) target = $region49
    $region48: #{tpu_custom_call.1} parent=1 // pred_region
      %84 = dma.done [#allocation7], 1024
    $region49: #{tpu_custom_call.1} parent=1 // pred_fallthru
      _
    // Predicated region
    $region50: #{tpu_custom_call.1} parent=1 // pred_check
      _
    $region51: #{tpu_custom_call.1} parent=1 // pred_check_branch
      %86 = sbr.rel (0) target = $region53
    $region52: #{tpu_custom_call.1} parent=1 // pred_region
      %87 = dma.done [#allocation10], 1024
    $region53: #{tpu_custom_call.1} parent=1 // pred_fallthru
      _
    %v88 = vld [vmem:[#allocation3] sm:$0xff]
    %v89 = vld [vmem:[#allocation6] sm:$0xff]
    %v90 = vld [vmem:[#allocation6 + $0x8] sm:$0xff]
    %v91 = vld [vmem:[#allocation6 + $0x10] sm:$0x1f]
    %v92 = vld [vmem:[%s2] sm:$0x1]
    %v94 = vlaneseq
    %v95 = vshrl.u32 %v94, 7
    %v96 = vsub.s32 0, %v95
    %v97 = vrot.slane %v92, %v96
    %vm99 = vcmask 171008
    %v101 = vsel %vm99, %v88, 0
    %vm103 = vcmask 1044480
    %v105 = vsel %vm103, %v91, 0
    %107 = vmatprep.subr.mxu0 0.0
    %108 = vmatpush1.msra.mxu0 0.0
    %109 = vmatprep.subr.mxu0 0.0
    %110 = vmatpush1.msra.mxu0 0.0
    %111 = vmatprep.subr.mxu0 0.0
    %112 = vmatpush1.msra.mxu0 0.0
    %113 = vmatprep.subr.mxu0 0.0
    %114 = vmatpush1.msra.mxu0 0.0
    %115 = vmatprep.subr.mxu0 0.0
    %116 = vmatpush1.msra.mxu0 0.0
    %117 = vmatprep.subr.mxu0 0.0
    %118 = vmatpush1.msra.mxu0 0.0
    %119 = vmatprep.subr.mxu0 0.0
    %120 = vmatpush1.msra.mxu0 0.0
    %121 = vmatprep.subr.mxu0 0.0
    %122 = vmatpush1.msra.mxu0 0.0
    %123 = vmatprep.subr.mxu0 0.0
    %124 = vmatpush1.msra.mxu0 0.0
    %125 = vmatprep.subr.mxu0 0.0
    %126 = vmatpush1.msra.mxu0 0.0
    %127 = vmatprep.subr.mxu0 0.0
    %128 = vmatpush1.msra.mxu0 0.0
    %129 = vmatprep.subr.mxu0 0.0
    %130 = vmatpush1.msra.mxu0 0.0
    %131 = vmatprep.subr.mxu0 0.0
    %132 = vmatpush1.msra.mxu0 0.0
    %133 = vmatprep.subr.mxu0 0.0
    %134 = vmatpush1.msra.mxu0 %v105
    %135 = vmatprep.subr.mxu0 0.0
    %136 = vmatpush1.msra.mxu0 %v90
    %137 = vmatprep.subr.mxu0 0.0
    %138 = vmatpush1.msra.mxu0 %v89
    %139 = vmatprep.subr.mxu0 0.0
    %140 = vmatpush2.msra.mxu0 0.0
    %141 = vmatprep.subr.mxu0 0.0
    %142 = vmatpush2.msra.mxu0 0.0
    %143 = vmatprep.subr.mxu0 0.0
    %144 = vmatpush2.msra.mxu0 0.0
    %145 = vmatprep.subr.mxu0 0.0
    %146 = vmatpush2.msra.mxu0 0.0
    %147 = vmatprep.subr.mxu0 0.0
    %148 = vmatpush2.msra.mxu0 0.0
    %149 = vmatprep.subr.mxu0 0.0
    %150 = vmatpush2.msra.mxu0 0.0
    %151 = vmatprep.subr.mxu0 0.0
    %152 = vmatpush2.msra.mxu0 0.0
    %153 = vmatprep.subr.mxu0 0.0
    %154 = vmatpush2.msra.mxu0 0.0
    %155 = vmatprep.subr.mxu0 0.0
    %156 = vmatpush2.msra.mxu0 0.0
    %157 = vmatprep.subr.mxu0 0.0
    %158 = vmatpush2.msra.mxu0 0.0
    %159 = vmatprep.subr.mxu0 0.0
    %160 = vmatpush2.msra.mxu0 0.0
    %161 = vmatprep.subr.mxu0 0.0
    %162 = vmatpush2.msra.mxu0 0.0
    %163 = vmatprep.subr.mxu0 0.0
    %164 = vmatpush2.msra.mxu0 0.0
    %165 = vmatprep.subr.mxu0 0.0
    %166 = vmatpush2.msra.mxu0 0.0
    %167 = vmatprep.subr.mxu0 0.0
    %168 = vmatpush2.msra.mxu0 0.0
    %169 = vmatprep.subr.mxu0 0.0
    %170 = vmatpush2.msra.mxu0 0.0
    %171 = vmatprep.mubr.f32.mxu0 0.0
    %172 = vmatmul.mubr.f32.gmra.mxu0 %v101
    %v173 = vpop.f32.mrf.mxu0
    %v174 = vadd.f32 %v97, %v173
    %v175 = vpop.f32.mrf.mxu0
    %176 = vdwg.mxu0
    %v177 = vmax.f32 %v174, 0.0
    %v178 = vld [vmem:[#allocation8] sm:$0xff]
    %v179 = vld [vmem:[#allocation8 + $0x8] sm:$0xff]
    %v180 = vld [vmem:[#allocation8 + $0x10] sm:$0xff]
    %v181 = vld [vmem:[#allocation8 + $0x18] sm:$0xff]
    %v182 = vld [vmem:[#allocation8 + $0x20] sm:$0xff]
    %v183 = vld [vmem:[#allocation8 + $0x28] sm:$0xff]
    %v184 = vld [vmem:[#allocation8 + $0x30] sm:$0xff]
    %v185 = vld [vmem:[#allocation8 + $0x38] sm:$0xff]
    %v186 = vld [vmem:[%s4] sm:$0x1]
    %v188 = vlaneseq
    %v189 = vshrl.u32 %v188, 7
    %v190 = vsub.s32 0, %v189
    %v191 = vrot.slane %v186, %v190
    %vm193 = vcmask 523264
    %v195 = vsel %vm193, %v177, 0
    %197 = vmatprep.subr.mxu0 0.0
    %198 = vmatpush1.msra.mxu0 0.0
    %199 = vmatprep.subr.mxu0 0.0
    %200 = vmatpush1.msra.mxu0 0.0
    %201 = vmatprep.subr.mxu0 0.0
    %202 = vmatpush1.msra.mxu0 0.0
    %203 = vmatprep.subr.mxu0 0.0
    %204 = vmatpush1.msra.mxu0 0.0
    %205 = vmatprep.subr.mxu0 0.0
    %206 = vmatpush1.msra.mxu0 0.0
    %207 = vmatprep.subr.mxu0 0.0
    %208 = vmatpush1.msra.mxu0 0.0
    %209 = vmatprep.subr.mxu0 0.0
    %210 = vmatpush1.msra.mxu0 0.0
    %211 = vmatprep.subr.mxu0 0.0
    %212 = vmatpush1.msra.mxu0 0.0
    %213 = vmatprep.subr.mxu0 0.0
    %214 = vmatpush1.msra.mxu0 %v185
    %215 = vmatprep.subr.mxu0 0.0
    %216 = vmatpush1.msra.mxu0 %v184
    %217 = vmatprep.subr.mxu0 0.0
    %218 = vmatpush1.msra.mxu0 %v183
    %219 = vmatprep.subr.mxu0 0.0
    %220 = vmatpush1.msra.mxu0 %v182
    %221 = vmatprep.subr.mxu0 0.0
    %222 = vmatpush1.msra.mxu0 %v181
    %223 = vmatprep.subr.mxu0 0.0
    %224 = vmatpush1.msra.mxu0 %v180
    %225 = vmatprep.subr.mxu0 0.0
    %226 = vmatpush1.msra.mxu0 %v179
    %227 = vmatprep.subr.mxu0 0.0
    %228 = vmatpush1.msra.mxu0 %v178
    %229 = vmatprep.subr.mxu0 0.0
    %230 = vmatpush2.msra.mxu0 0.0
    %231 = vmatprep.subr.mxu0 0.0
    %232 = vmatpush2.msra.mxu0 0.0
    %233 = vmatprep.subr.mxu0 0.0
    %234 = vmatpush2.msra.mxu0 0.0
    %235 = vmatprep.subr.mxu0 0.0
    %236 = vmatpush2.msra.mxu0 0.0
    %237 = vmatprep.subr.mxu0 0.0
    %238 = vmatpush2.msra.mxu0 0.0
    %239 = vmatprep.subr.mxu0 0.0
    %240 = vmatpush2.msra.mxu0 0.0
    %241 = vmatprep.subr.mxu0 0.0
    %242 = vmatpush2.msra.mxu0 0.0
    %243 = vmatprep.subr.mxu0 0.0
    %244 = vmatpush2.msra.mxu0 0.0
    %245 = vmatprep.subr.mxu0 0.0
    %246 = vmatpush2.msra.mxu0 0.0
    %247 = vmatprep.subr.mxu0 0.0
    %248 = vmatpush2.msra.mxu0 0.0
    %249 = vmatprep.subr.mxu0 0.0
    %250 = vmatpush2.msra.mxu0 0.0
    %251 = vmatprep.subr.mxu0 0.0
    %252 = vmatpush2.msra.mxu0 0.0
    %253 = vmatprep.subr.mxu0 0.0
    %254 = vmatpush2.msra.mxu0 0.0
    %255 = vmatprep.subr.mxu0 0.0
    %256 = vmatpush2.msra.mxu0 0.0
    %257 = vmatprep.subr.mxu0 0.0
    %258 = vmatpush2.msra.mxu0 0.0
    %259 = vmatprep.subr.mxu0 0.0
    %260 = vmatpush2.msra.mxu0 0.0
    %261 = vmatprep.mubr.f32.mxu0 0.0
    %262 = vmatmul.mubr.f32.gmra.mxu0 %v195
    %v263 = vpop.f32.mrf.mxu0
    %v264 = vadd.f32 %v191, %v263
    %v265 = vpop.f32.mrf.mxu0
    %266 = vdwg.mxu0
    %v267 = vmax.f32 %v264, 0.0
    %v268 = vld [vmem:[#allocation9] sm:$0xff]
    %v269 = vld [vmem:[#allocation9 + $0x8] sm:$0xff]
    %v270 = vld [vmem:[#allocation9 + $0x10] sm:$0xff]
    %v271 = vld [vmem:[#allocation9 + $0x18] sm:$0xff]
    %v272 = vld [vmem:[#allocation9 + $0x20] sm:$0xff]
    %v273 = vld [vmem:[#allocation9 + $0x28] sm:$0xff]
    %v274 = vld [vmem:[#allocation9 + $0x30] sm:$0xff]
    %v275 = vld [vmem:[#allocation9 + $0x38] sm:$0xff]
    %v276 = vld [vmem:[%s6] sm:$0x1]
    %v278 = vlaneseq
    %v279 = vshrl.u32 %v278, 7
    %v280 = vsub.s32 0, %v279
    %v281 = vrot.slane %v276, %v280
    %v284 = vsel %vm193, %v267, 0
    %286 = vmatprep.subr.mxu0 0.0
    %287 = vmatpush1.msra.mxu0 0.0
    %288 = vmatprep.subr.mxu0 0.0
    %289 = vmatpush1.msra.mxu0 0.0
    %290 = vmatprep.subr.mxu0 0.0
    %291 = vmatpush1.msra.mxu0 0.0
    %292 = vmatprep.subr.mxu0 0.0
    %293 = vmatpush1.msra.mxu0 0.0
    %294 = vmatprep.subr.mxu0 0.0
    %295 = vmatpush1.msra.mxu0 0.0
    %296 = vmatprep.subr.mxu0 0.0
    %297 = vmatpush1.msra.mxu0 0.0
    %298 = vmatprep.subr.mxu0 0.0
    %299 = vmatpush1.msra.mxu0 0.0
    %300 = vmatprep.subr.mxu0 0.0
    %301 = vmatpush1.msra.mxu0 0.0
    %302 = vmatprep.subr.mxu0 0.0
    %303 = vmatpush1.msra.mxu0 %v275
    %304 = vmatprep.subr.mxu0 0.0
    %305 = vmatpush1.msra.mxu0 %v274
    %306 = vmatprep.subr.mxu0 0.0
    %307 = vmatpush1.msra.mxu0 %v273
    %308 = vmatprep.subr.mxu0 0.0
    %309 = vmatpush1.msra.mxu0 %v272
    %310 = vmatprep.subr.mxu0 0.0
    %311 = vmatpush1.msra.mxu0 %v271
    %312 = vmatprep.subr.mxu0 0.0
    %313 = vmatpush1.msra.mxu0 %v270
    %314 = vmatprep.subr.mxu0 0.0
    %315 = vmatpush1.msra.mxu0 %v269
    %316 = vmatprep.subr.mxu0 0.0
    %317 = vmatpush1.msra.mxu0 %v268
    %318 = vmatprep.subr.mxu0 0.0
    %319 = vmatpush2.msra.mxu0 0.0
    %320 = vmatprep.subr.mxu0 0.0
    %321 = vmatpush2.msra.mxu0 0.0
    %322 = vmatprep.subr.mxu0 0.0
    %323 = vmatpush2.msra.mxu0 0.0
    %324 = vmatprep.subr.mxu0 0.0
    %325 = vmatpush2.msra.mxu0 0.0
    %326 = vmatprep.subr.mxu0 0.0
    %327 = vmatpush2.msra.mxu0 0.0
    %328 = vmatprep.subr.mxu0 0.0
    %329 = vmatpush2.msra.mxu0 0.0
    %330 = vmatprep.subr.mxu0 0.0
    %331 = vmatpush2.msra.mxu0 0.0
    %332 = vmatprep.subr.mxu0 0.0
    %333 = vmatpush2.msra.mxu0 0.0
    %334 = vmatprep.subr.mxu0 0.0
    %335 = vmatpush2.msra.mxu0 0.0
    %336 = vmatprep.subr.mxu0 0.0
    %337 = vmatpush2.msra.mxu0 0.0
    %338 = vmatprep.subr.mxu0 0.0
    %339 = vmatpush2.msra.mxu0 0.0
    %340 = vmatprep.subr.mxu0 0.0
    %341 = vmatpush2.msra.mxu0 0.0
    %342 = vmatprep.subr.mxu0 0.0
    %343 = vmatpush2.msra.mxu0 0.0
    %344 = vmatprep.subr.mxu0 0.0
    %345 = vmatpush2.msra.mxu0 0.0
    %346 = vmatprep.subr.mxu0 0.0
    %347 = vmatpush2.msra.mxu0 0.0
    %348 = vmatprep.subr.mxu0 0.0
    %349 = vmatpush2.msra.mxu0 0.0
    %350 = vmatprep.mubr.f32.mxu0 0.0
    %351 = vmatmul.mubr.f32.gmra.mxu0 %v284
    %v352 = vpop.f32.mrf.mxu0
    %v353 = vadd.f32 %v281, %v352
    %v354 = vpop.f32.mrf.mxu0
    %355 = vdwg.mxu0
    %v356 = vmax.f32 %v353, 0.0
    %v357 = vld [vmem:[%s7] sm:$0x1]
    %v358 = vld [vmem:[#allocation2] sm:$0x1]
    %360 = vset.pattern.permute.xlu0 0
    %361 = vperm.xlu0 %360, %v358
    %v362 = vpop.permute.xlu0 %361
    %v364 = vlaneseq
    %v365 = vshrl.u32 %v364, 7
    %v366 = vsub.s32 0, %v365
    %v367 = vrot.slane %v362, %v366
    %v369 = vsel %vm193, %v357, 0
    %v372 = vsel %vm193, %v356, 0
    %374 = vmatprep.subr.mxu0 0.0
    %375 = vmatpush1.xpose.msra.mxu0 0.0
    %376 = vmatprep.subr.mxu0 0.0
    %377 = vmatpush1.xpose.msra.mxu0 0.0
    %378 = vmatprep.subr.mxu0 0.0
    %379 = vmatpush1.xpose.msra.mxu0 0.0
    %380 = vmatprep.subr.mxu0 0.0
    %381 = vmatpush1.xpose.msra.mxu0 0.0
    %382 = vmatprep.subr.mxu0 0.0
    %383 = vmatpush1.xpose.msra.mxu0 0.0
    %384 = vmatprep.subr.mxu0 0.0
    %385 = vmatpush1.xpose.msra.mxu0 0.0
    %386 = vmatprep.subr.mxu0 0.0
    %387 = vmatpush1.xpose.msra.mxu0 0.0
    %388 = vmatprep.subr.mxu0 0.0
    %389 = vmatpush1.xpose.msra.mxu0 0.0
    %390 = vmatprep.subr.mxu0 0.0
    %391 = vmatpush1.xpose.msra.mxu0 0.0
    %392 = vmatprep.subr.mxu0 0.0
    %393 = vmatpush1.xpose.msra.mxu0 0.0
    %394 = vmatprep.subr.mxu0 0.0
    %395 = vmatpush1.xpose.msra.mxu0 0.0
    %396 = vmatprep.subr.mxu0 0.0
    %397 = vmatpush1.xpose.msra.mxu0 0.0
    %398 = vmatprep.subr.mxu0 0.0
    %399 = vmatpush1.xpose.msra.mxu0 0.0
    %400 = vmatprep.subr.mxu0 0.0
    %401 = vmatpush1.xpose.msra.mxu0 0.0
    %402 = vmatprep.subr.mxu0 0.0
    %403 = vmatpush1.xpose.msra.mxu0 0.0
    %404 = vmatprep.subr.mxu0 0.0
    %405 = vmatpush1.xpose.msra.mxu0 %v372
    %406 = vmatprep.subr.mxu0 0.0
    %407 = vmatpush2.xpose.msra.mxu0 0.0
    %408 = vmatprep.subr.mxu0 0.0
    %409 = vmatpush2.xpose.msra.mxu0 0.0
    %410 = vmatprep.subr.mxu0 0.0
    %411 = vmatpush2.xpose.msra.mxu0 0.0
    %412 = vmatprep.subr.mxu0 0.0
    %413 = vmatpush2.xpose.msra.mxu0 0.0
    %414 = vmatprep.subr.mxu0 0.0
    %415 = vmatpush2.xpose.msra.mxu0 0.0
    %416 = vmatprep.subr.mxu0 0.0
    %417 = vmatpush2.xpose.msra.mxu0 0.0
    %418 = vmatprep.subr.mxu0 0.0
    %419 = vmatpush2.xpose.msra.mxu0 0.0
    %420 = vmatprep.subr.mxu0 0.0
    %421 = vmatpush2.xpose.msra.mxu0 0.0
    %422 = vmatprep.subr.mxu0 0.0
    %423 = vmatpush2.xpose.msra.mxu0 0.0
    %424 = vmatprep.subr.mxu0 0.0
    %425 = vmatpush2.xpose.msra.mxu0 0.0
    %426 = vmatprep.subr.mxu0 0.0
    %427 = vmatpush2.xpose.msra.mxu0 0.0
    %428 = vmatprep.subr.mxu0 0.0
    %429 = vmatpush2.xpose.msra.mxu0 0.0
    %430 = vmatprep.subr.mxu0 0.0
    %431 = vmatpush2.xpose.msra.mxu0 0.0
    %432 = vmatprep.subr.mxu0 0.0
    %433 = vmatpush2.xpose.msra.mxu0 0.0
    %434 = vmatprep.subr.mxu0 0.0
    %435 = vmatpush2.xpose.msra.mxu0 0.0
    %436 = vmatprep.subr.mxu0 0.0
    %437 = vmatpush2.xpose.msra.mxu0 0.0
    %438 = vmatprep.mubr.f32.mxu0 0.0
    %439 = vmatmul.mubr.f32.gmra.mxu0 %v369
    %v440 = vpop.f32.mrf.mxu0
    %v441 = vadd.f32 %v367, %v440
    %v442 = vpop.f32.mrf.mxu0
    %443 = vdwg.mxu0
    %vm444 = vcmask 57344
    %445 = vst.msk [vmem:[#allocation11] sm:$0x1] %vm444, %v441
    // Predicated region
    $region54: #{tpu_custom_call.1} parent=1 // pred_check
      _
    $region55: #{tpu_custom_call.1} parent=1 // pred_check_branch
      %447 = sbr.rel (0) target = $region57
    $region56: #{tpu_custom_call.1} parent=1 // pred_region
      %s449 = ssub.s32 16, 16
      %450 = vsyncadd [#allocation5], %s449
      %s452 = sshll.u32 [#allocation11], 4
      %s453 = int_to_ptr.vmem [resolvable:$true] %s452
      %455 = dma.vmem_to_hbm [thread:$0]  %s453, 16, %s9, [#allocation5]
    $region57: #{tpu_custom_call.1} parent=1 // pred_fallthru
      _
    // Predicated region
    $region58: #{tpu_custom_call.1} parent=1 // pred_check
      _
    $region59: #{tpu_custom_call.1} parent=1 // pred_check_branch
      %457 = sbr.rel (0) target = $region61
    $region60: #{tpu_custom_call.1} parent=1 // pred_region
      %458 = dma.done [#allocation5], 16
    $region61: #{tpu_custom_call.1} parent=1 // pred_fallthru
      _
    %459 = vsyncpa [#allocation4], 1
    %460 = vsyncpa [#allocation7], 1
    %461 = vsyncpa [#allocation10], 1
    %462 = vsyncpa [#allocation5], 1

</llo_original>
